<compile_context>
chip_gen: v5e
topology: v5e:2x2
jax: 0.10.0
libtpu: 0.0.40
codegen_flags: <defaults>
</compile_context>

<pallas_src>
import functools

import jax
import jax.numpy as jnp
from jax import lax
from jax.experimental import pallas as pl
from jax.experimental.pallas import tpu as pltpu

EPS = 1e-5                      # PyTorch BatchNorm2d default
LANE = 128                      # TPU lane width
TILE_M_DEFAULT = 256            # rows per M tile
_VMEM_LIMIT = 32 * 1024 * 1024  # explicit scoped-VMEM cap, valid on v5e/v6e/v7x


def _round_up(x, m):
    return ((x + m - 1) // m) * m


# --------------------------- Pallas kernels ----------------------------------
def _matmul_stats_kernel(p_ref, w_ref, y_ref, sum_ref, sq_ref):
    """bf16 im2col matmul (f32 accumulate) + per-channel sum / sum-of-squares."""
    @pl.when(pl.program_id(0) == 0)
    def _():
        sum_ref[...] = jnp.zeros_like(sum_ref)
        sq_ref[...] = jnp.zeros_like(sq_ref)

    y = jnp.dot(p_ref[...], w_ref[...], preferred_element_type=jnp.float32)
    y_ref[...] = y.astype(y_ref.dtype)
    # Cross-sublane reductions go to the XLU slot -> overlap with MXU/DMA.
    sum_ref[...] += jnp.sum(y, axis=0, keepdims=True)
    sq_ref[...] += jnp.sum(y * y, axis=0, keepdims=True)


def _fold_bn(sum_v, sq_v, gamma, beta, inv_m, eps):
    """Fold batch stats + affine into a single per-channel (scale, shift)."""
    mean = sum_v * inv_m
    var = jnp.maximum(sq_v * inv_m - mean * mean, 0.0)   # biased variance
    scale = gamma * lax.rsqrt(var + eps)
    shift = beta - mean * scale
    return scale, shift


def _bn_epilogue_kernel(*refs, shortcut_mode, apply_relu, eps, inv_m):
    """y*scale + shift  [+ BN(shortcut conv) | + raw shortcut]  [+ ReLU]."""
    if shortcut_mode == "bn":
        (y_ref, s_ref, q_ref, g_ref, b_ref,
         ysc_ref, ssc_ref, qsc_ref, gsc_ref, bsc_ref, o_ref) = refs
    elif shortcut_mode == "raw":
        y_ref, s_ref, q_ref, g_ref, b_ref, sc_ref, o_ref = refs
    else:
        y_ref, s_ref, q_ref, g_ref, b_ref, o_ref = refs

    scale, shift = _fold_bn(s_ref[...], q_ref[...], g_ref[...], b_ref[...],
                            inv_m, eps)
    out = y_ref[...].astype(jnp.float32) * scale + shift

    if shortcut_mode == "bn":
        sc_scale, sc_shift = _fold_bn(ssc_ref[...], qsc_ref[...],
                                      gsc_ref[...], bsc_ref[...], inv_m, eps)
        out = out + ysc_ref[...].astype(jnp.float32) * sc_scale + sc_shift
    elif shortcut_mode == "raw":
        out = out + sc_ref[...].astype(jnp.float32)

    if apply_relu:
        out = jnp.maximum(out, 0.0)
    o_ref[...] = out.astype(o_ref.dtype)


# --------------------------- pallas_call wrappers -----------------------------
def _conv_stats_pass(p_bf16, w_bf16, tile_m, y_dtype):
    """Pass 1: tiled matmul + running per-channel sum / sum-of-squares."""
    Mp, K = p_bf16.shape
    Coutp = w_bf16.shape[1]
    grid = (Mp // tile_m,)
    return pl.pallas_call(
        _matmul_stats_kernel,
        out_shape=(jax.ShapeDtypeStruct((Mp, Coutp), y_dtype),
                   jax.ShapeDtypeStruct((1, Coutp), jnp.float32),
                   jax.ShapeDtypeStruct((1, Coutp), jnp.float32)),
        grid=grid,
        in_specs=[pl.BlockSpec((tile_m, K), lambda i: (i, 0)),
                  pl.BlockSpec((K, Coutp), lambda i: (0, 0))],
        out_specs=(pl.BlockSpec((tile_m, Coutp), lambda i: (i, 0)),
                   pl.BlockSpec((1, Coutp), lambda i: (0, 0)),
                   pl.BlockSpec((1, Coutp), lambda i: (0, 0))),
        compiler_params=pltpu.CompilerParams(
            dimension_semantics=("arbitrary",), vmem_limit_bytes=_VMEM_LIMIT),
    )(p_bf16, w_bf16)


def _bn_epilogue_pass(y, ysum, ysq, g, b, *, inv_m, tile_m, apply_relu,
                      out_dtype, shortcut=None, shortcut_stats=None):
    """Pass 2: normalize (+ shortcut) (+ ReLU), lane-dense stores, f32 math."""
    Mp, Coutp = y.shape
    grid = (Mp // tile_m,)
    row_spec = pl.BlockSpec((tile_m, Coutp), lambda i: (i, 0))
    vec_spec = pl.BlockSpec((1, Coutp), lambda i: (0, 0))

    args = [y, ysum, ysq, g, b]
    in_specs = [row_spec, vec_spec, vec_spec, vec_spec, vec_spec]
    if shortcut_stats is not None:
        shortcut_mode = "bn"
        ysc, ssc, qsc, gsc, bsc = shortcut_stats
        args += [ysc, ssc, qsc, gsc, bsc]
        in_specs += [row_spec, vec_spec, vec_spec, vec_spec, vec_spec]
    elif shortcut is not None:
        shortcut_mode = "raw"
        args.append(shortcut)
        in_specs.append(row_spec)
    else:
        shortcut_mode = None

    kernel = functools.partial(_bn_epilogue_kernel, shortcut_mode=shortcut_mode,
                               apply_relu=apply_relu, eps=EPS, inv_m=inv_m)
    return pl.pallas_call(
        kernel,
        out_shape=jax.ShapeDtypeStruct((Mp, Coutp), out_dtype),
        grid=grid,
        in_specs=in_specs,
        out_specs=row_spec,
        compiler_params=pltpu.CompilerParams(
            dimension_semantics=("parallel",), vmem_limit_bytes=_VMEM_LIMIT),
    )(*args)


# ----------------------------- JAX glue --------------------------------------
def im2col(x_nhwc, kh, kw, stride, padding):
    """Extract conv patches; rows ordered (n, ho, wo), cols ordered (ky, kx, ci)."""
    N, H, W, C = x_nhwc.shape
    Ho = (H + 2 * padding - kh) // stride + 1
    Wo = (W + 2 * padding - kw) // stride + 1
    xp = jnp.pad(x_nhwc, ((0, 0), (padding, padding), (padding, padding), (0, 0)))
    cols = []
    for ky in range(kh):
        for kx in range(kw):
            sl = xp[:, ky:ky + (Ho - 1) * stride + 1:stride,
                       kx:kx + (Wo - 1) * stride + 1:stride, :]
            cols.append(sl)
    patches = jnp.concatenate(cols, axis=-1)                 # (N, Ho, Wo, kh*kw*C)
    return patches.reshape(N * Ho * Wo, kh * kw * C), (N, Ho, Wo)


def flatten_weight(w_oihw):
    """PyTorch (Cout, Cin, KH, KW) -> (KH*KW*Cin, Cout); Cin is the fastest K axis."""
    return jnp.transpose(w_oihw, (2, 3, 1, 0)).reshape(-1, w_oihw.shape[0])


def _prep_weight(w_oihw, coutp):
    w = flatten_weight(w_oihw).astype(jnp.bfloat16)
    return jnp.pad(w, ((0, 0), (0, coutp - w.shape[1])))


def _prep_gamma_beta(gamma, beta, coutp):
    g = jnp.pad(gamma.astype(jnp.float32), (0, coutp - gamma.shape[0]),
                constant_values=1.0).reshape(1, coutp)
    b = jnp.pad(beta.astype(jnp.float32),
                (0, coutp - beta.shape[0])).reshape(1, coutp)
    return g, b


def _pad_rows(p, mp):
    return jnp.pad(p, ((0, mp - p.shape[0]), (0, 0)))


def residual_block_forward(x_nchw, params, stride, tile_m=TILE_M_DEFAULT):
    x_nhwc = jnp.transpose(x_nchw, (0, 2, 3, 1))
    x_bf16 = x_nhwc.astype(jnp.bfloat16)        # bf16 before im2col -> half HBM
    cin = x_nhwc.shape[-1]
    cout = params["w1"].shape[0]
    coutp = _round_up(cout, LANE)

    # ---- conv1 geometry / tiling ----
    p1, (N, Ho, Wo) = im2col(x_bf16, 3, 3, stride, 1)
    M = p1.shape[0]
    tile_m = min(tile_m, _round_up(M, 8))
    Mp = _round_up(M, tile_m)
    inv_m = 1.0 / M

    # ---- conv1 + BN1 + ReLU (h1 kept bf16: feeds conv2's im2col directly) ----
    w1 = _prep_weight(params["w1"], coutp)
    g1, b1 = _prep_gamma_beta(params["g1"], params["beta1"], coutp)
    y1, s1, q1 = _conv_stats_pass(_pad_rows(p1, Mp), w1, tile_m, jnp.bfloat16)
    h1 = _bn_epilogue_pass(y1, s1, q1, g1, b1, inv_m=inv_m, tile_m=tile_m,
                           apply_relu=True, out_dtype=jnp.bfloat16)
    h1_nhwc = h1[:M, :cout].reshape(N, Ho, Wo, cout)

    # ---- conv2 matmul + stats ----
    p2, _ = im2col(h1_nhwc, 3, 3, 1, 1)
    w2 = _prep_weight(params["w2"], coutp)
    g2, b2 = _prep_gamma_beta(params["g2"], params["beta2"], coutp)
    y2, s2, q2 = _conv_stats_pass(_pad_rows(p2, Mp), w2, tile_m, jnp.bfloat16)

    # ---- shortcut + fused BN2 / add / ReLU epilogue ----
    if stride != 1:
        # Projection shortcut: raw 1x1-conv matmul + stats, its BN is folded
        # into conv2's epilogue (no separate normalized-shortcut round trip).
        psc, _ = im2col(x_bf16, 1, 1, stride, 0)
        wsc = _prep_weight(params["wsc"], coutp)
        gsc, bsc = _prep_gamma_beta(params["gsc"], params["betasc"], coutp)
        ysc, ssc, qsc = _conv_stats_pass(_pad_rows(psc, Mp), wsc, tile_m,
                                         jnp.bfloat16)
        out = _bn_epilogue_pass(y2, s2, q2, g2, b2, inv_m=inv_m, tile_m=tile_m,
                                shortcut_stats=(ysc, ssc, qsc, gsc, bsc),
                                apply_relu=True, out_dtype=jnp.float32)
    else:
        assert cin == cout, "identity shortcut requires Cin == Cout"
        sc = jnp.pad(x_nhwc.reshape(-1, cin),
                     ((0, Mp - M), (0, coutp - cin)))
        out = _bn_epilogue_pass(y2, s2, q2, g2, b2, inv_m=inv_m, tile_m=tile_m,
                                shortcut=sc, apply_relu=True,
                                out_dtype=jnp.float32)

    return jnp.transpose(out[:M, :cout].reshape(N, Ho, Wo, cout), (0, 3, 1, 2))


# ----------------------------- pure-JAX reference ----------------------------
def _conv_ref(x, w, b, stride, padding):
    out = lax.conv_general_dilated(
        x, w, (stride, stride), [(padding, padding), (padding, padding)],
        dimension_numbers=("NCHW", "OIHW", "NCHW"))
    if b is not None:
        out = out + b[None, :, None, None]
    return out


def _bn_ref(y, gamma, beta):
    mean = jnp.mean(y, axis=(0, 2, 3), keepdims=True)
    var = jnp.mean((y - mean) ** 2, axis=(0, 2, 3), keepdims=True)
    return (y - mean) * gamma[None, :, None, None] / jnp.sqrt(var + EPS) \
        + beta[None, :, None, None]


def residual_block_ref(x, params, stride):
    h = jax.nn.relu(_bn_ref(_conv_ref(x, params["w1"], params["b1"], stride, 1),
                            params["g1"], params["beta1"]))
    h = _bn_ref(_conv_ref(h, params["w2"], params["b2"], 1, 1),
                params["g2"], params["beta2"])
    if stride != 1:
        sc = _bn_ref(_conv_ref(x, params["wsc"], None, stride, 0),
                     params["gsc"], params["betasc"])
    else:
        sc = x
    return jax.nn.relu(h + sc)


# ----------------------------- parameters ------------------------------------
def make_params(key, cin, cout, stride):
    ks = jax.random.split(key, 10)
    p = {
        "w1": 0.1 * jax.random.normal(ks[0], (cout, cin, 3, 3), jnp.float32),
        "b1": 0.05 * jax.random.normal(ks[1], (cout,), jnp.float32),
        "g1": 1.0 + 0.1 * jax.random.normal(ks[2], (cout,), jnp.float32),
        "beta1": 0.05 * jax.random.normal(ks[3], (cout,), jnp.float32),
        "w2": 0.1 * jax.random.normal(ks[4], (cout, cout, 3, 3), jnp.float32),
        "b2": 0.05 * jax.random.normal(ks[5], (cout,), jnp.float32),
        "g2": 1.0 + 0.1 * jax.random.normal(ks[6], (cout,), jnp.float32),
        "beta2": 0.05 * jax.random.normal(ks[7], (cout,), jnp.float32),
    }
    if stride != 1:
        p["wsc"] = 0.1 * jax.random.normal(ks[8], (cout, cin, 1, 1), jnp.float32)
        p["gsc"] = 1.0 + 0.1 * jax.random.normal(ks[9], (cout,), jnp.float32)
        p["betasc"] = jnp.zeros((cout,), jnp.float32)
    return p


if __name__ == "__main__":
    key = jax.random.PRNGKey(0)
    k_x, k_p1, k_p2 = jax.random.split(key, 3)

    # bf16 MXU operands / bf16 intermediate y with f32 accumulation & stats ->
    # relaxed but meaningful tolerance.
    TOL = dict(atol=3e-2, rtol=3e-2)

    # Case 1: stride=2 -> projection shortcut (1x1 conv + BN fused into epilogue)
    N, Cin, H, W, Cout = 2, 4, 16, 16, 8
    x = jax.random.normal(k_x, (N, Cin, H, W), jnp.float32)
    params = make_params(k_p1, Cin, Cout, stride=2)
    out = residual_block_forward(x, params, stride=2)
    jax.block_until_ready(out)
    ref = residual_block_ref(x, params, stride=2)
    assert out.shape == (N, Cout, H // 2, W // 2)
    assert jnp.allclose(out, ref, **TOL), "stride=2 mismatch"

    # Case 2: stride=1 -> identity shortcut (Cin == Cout); M=512 exercises the
    # multi-tile accumulator path (grid=(2,)).
    x1 = jax.random.normal(k_x, (N, Cout, H, W), jnp.float32)
    params1 = make_params(k_p2, Cout, Cout, stride=1)
    out1 = residual_block_forward(x1, params1, stride=1)
    jax.block_until_ready(out1)
    ref1 = residual_block_ref(x1, params1, stride=1)
    assert out1.shape == (N, Cout, H, W)
    assert jnp.allclose(out1, ref1, **TOL), "stride=1 mismatch"

    print("KERNEL_OK")
</pallas_src>

<mosaic_0001>
module attributes {stable_mosaic.version = 11 : i64} {
  func.func @_matmul_stats_kernel(%arg0: i32, %arg1: memref<128x36xbf16, #tpu.memory_space<vmem>>, %arg2: memref<36x128xbf16, #tpu.memory_space<vmem>>, %arg3: memref<128x128xbf16, #tpu.memory_space<vmem>>, %arg4: memref<1x128xf32, #tpu.memory_space<vmem>>, %arg5: memref<1x128xf32, #tpu.memory_space<vmem>>) attributes {dimension_semantics = [#tpu.dimension_semantics<arbitrary>], iteration_bounds = array<i64: 1>, scalar_prefetch = 0 : i64, scratch_operands = 0 : i64, tpu.core_type = #tpu.core_type<tc>, window_params = [{transform_indices = @transform_0, window_bounds = array<i64: 128, 36>}, {pipeline_mode = #tpu.pipeline_mode<synchronous>, transform_indices = @transform_1, window_bounds = array<i64: 36, 128>}, {transform_indices = @transform_2, window_bounds = array<i64: 128, 128>}, {pipeline_mode = #tpu.pipeline_mode<synchronous>, transform_indices = @transform_3, window_bounds = array<i64: 1, 128>}, {pipeline_mode = #tpu.pipeline_mode<synchronous>, transform_indices = @transform_4, window_bounds = array<i64: 1, 128>}]} {
    %c0_i32 = arith.constant 0 : i32
    %0 = arith.cmpi eq, %arg0, %c0_i32 : i32
    %1 = arith.extui %0 : i1 to i32
    %c0_i32_0 = arith.constant 0 : i32
    %2 = arith.cmpi ne, %1, %c0_i32_0 : i32
    scf.if %2 {
      %cst_16 = arith.constant 0.000000e+00 : f32
      %19 = vector.broadcast %cst_16 : f32 to vector<1x128xf32>
      %c0_17 = arith.constant 0 : index
      %c0_18 = arith.constant 0 : index
      %20 = vector.load %arg4[%c0_17, %c0_18] : memref<1x128xf32, #tpu.memory_space<vmem>>, vector<1x128xf32>
      tpu.vector_store %arg4[%c0_17, %c0_18], %19 {strides = array<i32>} : memref<1x128xf32, #tpu.memory_space<vmem>>, vector<1x128xf32>,
      %cst_19 = arith.constant 0.000000e+00 : f32
      %21 = vector.broadcast %cst_19 : f32 to vector<1x128xf32>
      %c0_20 = arith.constant 0 : index
      %c0_21 = arith.constant 0 : index
      %22 = vector.load %arg5[%c0_20, %c0_21] : memref<1x128xf32, #tpu.memory_space<vmem>>, vector<1x128xf32>
      tpu.vector_store %arg5[%c0_20, %c0_21], %21 {strides = array<i32>} : memref<1x128xf32, #tpu.memory_space<vmem>>, vector<1x128xf32>,
    } else {
    }
    %c0 = arith.constant 0 : index
    %c0_1 = arith.constant 0 : index
    %3 = vector.load %arg1[%c0, %c0_1] : memref<128x36xbf16, #tpu.memory_space<vmem>>, vector<128x36xbf16>
    %c0_2 = arith.constant 0 : index
    %c0_3 = arith.constant 0 : index
    %4 = vector.load %arg2[%c0_2, %c0_3] : memref<36x128xbf16, #tpu.memory_space<vmem>>, vector<36x128xbf16>
    %cst = arith.constant dense<0.000000e+00> : vector<128x128xf32>
    %5 = tpu.matmul %3, %4, %cst {dimension_numbers = #tpu.dot_dimension_numbers<[1], [0], [0], [1], [0, 0, 1, 1], [], []>} : vector<128x36xbf16>, vector<36x128xbf16>, vector<128x128xf32> -> vector<128x128xf32>
    %6 = arith.truncf %5 : vector<128x128xf32> to vector<128x128xbf16>
    %c0_4 = arith.constant 0 : index
    %c0_5 = arith.constant 0 : index
    %7 = vector.load %arg3[%c0_4, %c0_5] : memref<128x128xbf16, #tpu.memory_space<vmem>>, vector<128x128xbf16>
    tpu.vector_store %arg3[%c0_4, %c0_5], %6 {strides = array<i32>} : memref<128x128xbf16, #tpu.memory_space<vmem>>, vector<128x128xbf16>,
    %c0_6 = arith.constant 0 : index
    %c0_7 = arith.constant 0 : index
    %8 = vector.load %arg4[%c0_6, %c0_7] : memref<1x128xf32, #tpu.memory_space<vmem>>, vector<1x128xf32>
    %cst_8 = arith.constant dense<0.000000e+00> : vector<128xf32>
    %9 = vector.multi_reduction <add>, %5, %cst_8 [0] : vector<128x128xf32> to vector<128xf32>
    %10 = vector.shape_cast %9 : vector<128xf32> to vector<1x128xf32>
    %11 = arith.addf %8, %10 : vector<1x128xf32>
    %c0_9 = arith.constant 0 : index
    %c0_10 = arith.constant 0 : index
    %12 = vector.load %arg4[%c0_9, %c0_10] : memref<1x128xf32, #tpu.memory_space<vmem>>, vector<1x128xf32>
    tpu.vector_store %arg4[%c0_9, %c0_10], %11 {strides = array<i32>} : memref<1x128xf32, #tpu.memory_space<vmem>>, vector<1x128xf32>,
    %c0_11 = arith.constant 0 : index
    %c0_12 = arith.constant 0 : index
    %13 = vector.load %arg5[%c0_11, %c0_12] : memref<1x128xf32, #tpu.memory_space<vmem>>, vector<1x128xf32>
    %14 = arith.mulf %5, %5 : vector<128x128xf32>
    %cst_13 = arith.constant dense<0.000000e+00> : vector<128xf32>
    %15 = vector.multi_reduction <add>, %14, %cst_13 [0] : vector<128x128xf32> to vector<128xf32>
    %16 = vector.shape_cast %15 : vector<128xf32> to vector<1x128xf32>
    %17 = arith.addf %13, %16 : vector<1x128xf32>
    %c0_14 = arith.constant 0 : index
    %c0_15 = arith.constant 0 : index
    %18 = vector.load %arg5[%c0_14, %c0_15] : memref<1x128xf32, #tpu.memory_space<vmem>>, vector<1x128xf32>
    tpu.vector_store %arg5[%c0_14, %c0_15], %17 {strides = array<i32>} : memref<1x128xf32, #tpu.memory_space<vmem>>, vector<1x128xf32>,
    return
  }
  func.func @transform_0(%arg0: i32) -> (i32, i32) {
    %c0_i32 = arith.constant 0 : i32
    %c0_i32_0 = arith.constant 0 : i32
    return %arg0, %c0_i32 : i32, i32
  }
  func.func @transform_1(%arg0: i32) -> (i32, i32) {
    %c0_i32 = arith.constant 0 : i32
    %c0_i32_0 = arith.constant 0 : i32
    %c0_i32_1 = arith.constant 0 : i32
    return %c0_i32, %c0_i32_0 : i32, i32
  }
  func.func @transform_2(%arg0: i32) -> (i32, i32) {
    %c0_i32 = arith.constant 0 : i32
    %c0_i32_0 = arith.constant 0 : i32
    return %arg0, %c0_i32 : i32, i32
  }
  func.func @transform_3(%arg0: i32) -> (i32, i32) {
    %c0_i32 = arith.constant 0 : i32
    %c0_i32_0 = arith.constant 0 : i32
    %c0_i32_1 = arith.constant 0 : i32
    return %c0_i32, %c0_i32_0 : i32, i32
  }
  func.func @transform_4(%arg0: i32) -> (i32, i32) {
    %c0_i32 = arith.constant 0 : i32
    %c0_i32_0 = arith.constant 0 : i32
    %c0_i32_1 = arith.constant 0 : i32
    return %c0_i32, %c0_i32_0 : i32, i32
  }
}

</mosaic_0001>

<llo_original>
// kernel: tpu_custom_call.1
$region0: #{tpu_custom_call.1}
  #allocation0 [shape = 'u32[]', space=smem, size = 0x4, offset = 0x4, fixed_abs, tag = 'smem constant byte address 0x4 - core index']
  #allocation1 [shape = 'u32[72,128]{1,0:T(1,128)}', space=vmem, size = 0x9000, scoped, tag = 'internal scratch']
  %s0 = inlined_call_operand.vmem [shape: bf16[128,36], index: 0, kind: input, shape index: {}]
  %s1 = inlined_call_operand.vmem [shape: bf16[36,128], index: 1, kind: input, shape index: {}]
  %s2 = inlined_call_operand.hbm [shape: bf16[128,128], index: 2, kind: output, shape index: {0}]
  %s3 = inlined_call_operand.hbm [shape: f32[1,128], index: 3, kind: output, shape index: {1}]
  %s4 = inlined_call_operand.hbm [shape: f32[1,128], index: 4, kind: output, shape index: {2}]
  %5 = xla_tuple %s2, %s3, %s4
  %s6 = sld [smem:[#allocation0]]
  $region38: #{tpu_custom_call.1} parent=0
    _
  %s8 = ssub.s32 1, %s6
  %s9 = scalar_select 0, %s8, %s6
  $region1: #{tpu_custom_call.1} parent=0
    #allocation2 [shape = 'u8[32768]{0}', space=vmem, size = 0x8000, scoped, tag = 'output window, operand 0, single buffered']
    #allocation3 [shape = 's32[1]{0}', space=sflag, size = 0x4, scoped, tag = 'scoped memory for tpu_custom_call.1']
    #allocation4 [shape = 'u8[512]{0}', space=vmem, size = 0x400, scoped, tag = 'output window, operand 1, single buffered']
    #allocation5 [shape = 's32[1]{0}', space=sflag, size = 0x4, scoped, tag = 'scoped memory for tpu_custom_call.1']
    #allocation6 [shape = 'u8[512]{0}', space=vmem, size = 0x400, scoped, tag = 'output window, operand 2, single buffered']
    %10 = vsyncpa [#allocation3], 0
    %11 = vsyncpa [#allocation5], 0
    // Predicated region
    $region2: #{tpu_custom_call.1} parent=1 // pred_check
      _
    $region3: #{tpu_custom_call.1} parent=1 // pred_check_branch
      %13 = sbr.rel (0) target = $region5
    $region4: #{tpu_custom_call.1} parent=1 // pred_region
      _
    $region5: #{tpu_custom_call.1} parent=1 // pred_fallthru
      _
    // Predicated region
    $region6: #{tpu_custom_call.1} parent=1 // pred_check
      _
    $region7: #{tpu_custom_call.1} parent=1 // pred_check_branch
      %15 = sbr.rel (0) target = $region9
    $region8: #{tpu_custom_call.1} parent=1 // pred_region
      _
    $region9: #{tpu_custom_call.1} parent=1 // pred_fallthru
      _
    %p17 = scmp.eq.s32.totalorder 0, 0
    // Predicated region
    $region10: #{tpu_custom_call.1} parent=1 // pred_check
      %p18 = pneg %p17
    $region11: #{tpu_custom_call.1} parent=1 // pred_check_branch
      %20 = sbr.rel (%p18) target = $region13
    $region12: #{tpu_custom_call.1} parent=1 // pred_region
      %21 = vst [vmem:[#allocation4] sm:$0x1] 0.0
      %22 = vst [vmem:[#allocation6] sm:$0x1] 0.0
    $region13: #{tpu_custom_call.1} parent=1 // pred_fallthru
      _
    %v23 = vld [vmem:[%s0] sm:$0xf]
    %v24 = vld [vmem:[%s0 + $0x4] sm:$0xf]
    %v25 = vld [vmem:[%s0 + $0x8] sm:$0xf]
    %v26 = vld [vmem:[%s0 + $0xc] sm:$0xf]
    %v27 = vld [vmem:[%s0 + $0x10] sm:$0xf]
    %v28 = vld [vmem:[%s0 + $0x14] sm:$0xf]
    %v29 = vld [vmem:[%s0 + $0x18] sm:$0xf]
    %v30 = vld [vmem:[%s0 + $0x1c] sm:$0xf]
    %v31 = vld [vmem:[%s0 + $0x20] sm:$0xf]
    %v32 = vld [vmem:[%s0 + $0x24] sm:$0xf]
    %v33 = vld [vmem:[%s0 + $0x28] sm:$0xf]
    %v34 = vld [vmem:[%s0 + $0x2c] sm:$0xf]
    %v35 = vld [vmem:[%s0 + $0x30] sm:$0xf]
    %v36 = vld [vmem:[%s0 + $0x34] sm:$0xf]
    %v37 = vld [vmem:[%s0 + $0x38] sm:$0xf]
    %v38 = vld [vmem:[%s0 + $0x3c] sm:$0xf]
    %v39 = vld [vmem:[%s1] sm:$0xf]
    %v40 = vld [vmem:[%s1 + $0x4] sm:$0xf]
    %v41 = vld [vmem:[%s1 + $0x8] sm:$0xf]
    %v42 = vld [vmem:[%s1 + $0xc] sm:$0xf]
    %v43 = vld [vmem:[%s1 + $0x10] sm:$0x3]
    %v60 = vunpack.c.l.b16 %v23
    %v61 = vunpack.c.l.b16 %v24
    %v62 = vunpack.c.l.b16 %v25
    %v63 = vunpack.c.l.b16 %v26
    %v64 = vunpack.c.l.b16 %v27
    %v65 = vunpack.c.l.b16 %v28
    %v66 = vunpack.c.l.b16 %v29
    %v67 = vunpack.c.l.b16 %v30
    %v68 = vunpack.c.l.b16 %v31
    %v69 = vunpack.c.l.b16 %v32
    %v70 = vunpack.c.l.b16 %v33
    %v71 = vunpack.c.l.b16 %v34
    %v72 = vunpack.c.l.b16 %v35
    %v73 = vunpack.c.l.b16 %v36
    %v74 = vunpack.c.l.b16 %v37
    %v75 = vunpack.c.l.b16 %v38
    %v76 = vpack.c.b16 %v61, %v60
    %v77 = vpack.c.b16 %v63, %v62
    %v78 = vpack.c.b16 %v65, %v64
    %v79 = vpack.c.b16 %v67, %v66
    %v80 = vpack.c.b16 %v69, %v68
    %v81 = vpack.c.b16 %v71, %v70
    %v82 = vpack.c.b16 %v73, %v72
    %v83 = vpack.c.b16 %v75, %v74
    %v89 = vunpack.c.l.b16 %v39
    %v90 = vunpack.c.l.b16 %v40
    %v91 = vunpack.c.l.b16 %v41
    %v92 = vunpack.c.l.b16 %v42
    %v93 = vunpack.c.l.b16 %v43
    %v94 = vpack.c.b16 %v90, %v89
    %v95 = vpack.c.b16 %v92, %v91
    %v96 = vpack.c.b16 %v93, %v93
    %vm99 = vcmask 293888
    %v101 = vsel %vm99, %v76, 0
    %v104 = vsel %vm99, %v77, 0
    %v107 = vsel %vm99, %v78, 0
    %v110 = vsel %vm99, %v79, 0
    %v113 = vsel %vm99, %v80, 0
    %v116 = vsel %vm99, %v81, 0
    %v119 = vsel %vm99, %v82, 0
    %v122 = vsel %vm99, %v83, 0
    %vm124 = vcmask 1041408
    %v126 = vsel %vm124, %v96, 0
    %128 = vmatpush.bf16.msra.mxu0 0
    %129 = vmatpush.bf16.msra.mxu0 0
    %130 = vmatpush.bf16.msra.mxu0 0
    %131 = vmatpush.bf16.msra.mxu0 0
    %132 = vmatpush.bf16.msra.mxu0 0
    %133 = vmatpush.bf16.msra.mxu0 %v126
    %134 = vmatpush.bf16.msra.mxu0 %v95
    %135 = vmatpush.bf16.msra.mxu0 %v94
    %136 = vmatmul.bf16.gmra.mxu0 %v101
    %v137 = vpop.f32.mrf.mxu0
    %v138 = vadd.f32 0.0, %v137
    %v139 = vpop.f32.mrf.mxu0
    %v140 = vadd.f32 0.0, %v139
    %141 = vmatmul.bf16.gmra.mxu0 %v104
    %v142 = vpop.f32.mrf.mxu0
    %v143 = vadd.f32 0.0, %v142
    %v144 = vpop.f32.mrf.mxu0
    %v145 = vadd.f32 0.0, %v144
    %146 = vmatmul.bf16.gmra.mxu0 %v107
    %v147 = vpop.f32.mrf.mxu0
    %v148 = vadd.f32 0.0, %v147
    %v149 = vpop.f32.mrf.mxu0
    %v150 = vadd.f32 0.0, %v149
    %151 = vmatmul.bf16.gmra.mxu0 %v110
    %v152 = vpop.f32.mrf.mxu0
    %v153 = vadd.f32 0.0, %v152
    %v154 = vpop.f32.mrf.mxu0
    %v155 = vadd.f32 0.0, %v154
    %156 = vmatmul.bf16.gmra.mxu0 %v113
    %v157 = vpop.f32.mrf.mxu0
    %v158 = vadd.f32 0.0, %v157
    %v159 = vpop.f32.mrf.mxu0
    %v160 = vadd.f32 0.0, %v159
    %161 = vmatmul.bf16.gmra.mxu0 %v116
    %v162 = vpop.f32.mrf.mxu0
    %v163 = vadd.f32 0.0, %v162
    %v164 = vpop.f32.mrf.mxu0
    %v165 = vadd.f32 0.0, %v164
    %166 = vmatmul.bf16.gmra.mxu0 %v119
    %v167 = vpop.f32.mrf.mxu0
    %v168 = vadd.f32 0.0, %v167
    %v169 = vpop.f32.mrf.mxu0
    %v170 = vadd.f32 0.0, %v169
    %171 = vmatmul.bf16.gmra.mxu0 %v122
    %v172 = vpop.f32.mrf.mxu0
    %v173 = vadd.f32 0.0, %v172
    %v174 = vpop.f32.mrf.mxu0
    %v175 = vadd.f32 0.0, %v174
    %176 = vdwg.mxu0
    %v177 = vpack.c.bf16 %v138, %v138
    %v178 = vpack.c.bf16 %v140, %v140
    %v179 = vpack.c.bf16 %v143, %v143
    %v180 = vpack.c.bf16 %v145, %v145
    %v181 = vpack.c.bf16 %v148, %v148
    %v182 = vpack.c.bf16 %v150, %v150
    %v183 = vpack.c.bf16 %v153, %v153
    %v184 = vpack.c.bf16 %v155, %v155
    %v185 = vpack.c.bf16 %v158, %v158
    %v186 = vpack.c.bf16 %v160, %v160
    %v187 = vpack.c.bf16 %v163, %v163
    %v188 = vpack.c.bf16 %v165, %v165
    %v189 = vpack.c.bf16 %v168, %v168
    %v190 = vpack.c.bf16 %v170, %v170
    %v191 = vpack.c.bf16 %v173, %v173
    %v192 = vpack.c.bf16 %v175, %v175
    %193 = vst [vmem:[#allocation2] sm:$0xf] %v177
    %194 = vst [vmem:[#allocation2 + $0x4] sm:$0xf] %v178
    %195 = vst [vmem:[#allocation2 + $0x8] sm:$0xf] %v179
    %196 = vst [vmem:[#allocation2 + $0xc] sm:$0xf] %v180
    %197 = vst [vmem:[#allocation2 + $0x10] sm:$0xf] %v181
    %198 = vst [vmem:[#allocation2 + $0x14] sm:$0xf] %v182
    %199 = vst [vmem:[#allocation2 + $0x18] sm:$0xf] %v183
    %200 = vst [vmem:[#allocation2 + $0x1c] sm:$0xf] %v184
    %201 = vst [vmem:[#allocation2 + $0x20] sm:$0xf] %v185
    %202 = vst [vmem:[#allocation2 + $0x24] sm:$0xf] %v186
    %203 = vst [vmem:[#allocation2 + $0x28] sm:$0xf] %v187
    %204 = vst [vmem:[#allocation2 + $0x2c] sm:$0xf] %v188
    %205 = vst [vmem:[#allocation2 + $0x30] sm:$0xf] %v189
    %206 = vst [vmem:[#allocation2 + $0x34] sm:$0xf] %v190
    %207 = vst [vmem:[#allocation2 + $0x38] sm:$0xf] %v191
    %208 = vst [vmem:[#allocation2 + $0x3c] sm:$0xf] %v192
    %v209 = vld [vmem:[#allocation4] sm:$0x1]
    %v210 = vadd.f32 %v138, %v140
    %v211 = vadd.f32 %v210, %v143
    %v212 = vadd.f32 %v211, %v145
    %v213 = vadd.f32 %v212, %v148
    %v214 = vadd.f32 %v213, %v150
    %v215 = vadd.f32 %v214, %v153
    %v216 = vadd.f32 %v215, %v155
    %v217 = vadd.f32 %v216, %v158
    %v218 = vadd.f32 %v217, %v160
    %v219 = vadd.f32 %v218, %v163
    %v220 = vadd.f32 %v219, %v165
    %v221 = vadd.f32 %v220, %v168
    %v222 = vadd.f32 %v221, %v170
    %v223 = vadd.f32 %v222, %v173
    %v224 = vadd.f32 %v223, %v175
    %v225 = vrot.slane %v224, 4
    %v226 = vadd.f32 %v224, %v225
    %v227 = vrot.slane %v226, 2
    %v228 = vadd.f32 %v226, %v227
    %v229 = vrot.slane %v228, 1
    %v230 = vadd.f32 %v228, %v229
    %v231 = vadd.f32 %v209, %v230
    %232 = vst [vmem:[#allocation4] sm:$0x1] %v231
    %v233 = vld [vmem:[#allocation6] sm:$0x1]
    %v234 = vmul.f32 %v138, %v138
    %v235 = vmul.f32 %v140, %v140
    %v236 = vmul.f32 %v143, %v143
    %v237 = vmul.f32 %v145, %v145
    %v238 = vmul.f32 %v148, %v148
    %v239 = vmul.f32 %v150, %v150
    %v240 = vmul.f32 %v153, %v153
    %v241 = vmul.f32 %v155, %v155
    %v242 = vmul.f32 %v158, %v158
    %v243 = vmul.f32 %v160, %v160
    %v244 = vmul.f32 %v163, %v163
    %v245 = vmul.f32 %v165, %v165
    %v246 = vmul.f32 %v168, %v168
    %v247 = vmul.f32 %v170, %v170
    %v248 = vmul.f32 %v173, %v173
    %v249 = vmul.f32 %v175, %v175
    %v250 = vadd.f32 %v234, %v235
    %v251 = vadd.f32 %v250, %v236
    %v252 = vadd.f32 %v251, %v237
    %v253 = vadd.f32 %v252, %v238
    %v254 = vadd.f32 %v253, %v239
    %v255 = vadd.f32 %v254, %v240
    %v256 = vadd.f32 %v255, %v241
    %v257 = vadd.f32 %v256, %v242
    %v258 = vadd.f32 %v257, %v243
    %v259 = vadd.f32 %v258, %v244
    %v260 = vadd.f32 %v259, %v245
    %v261 = vadd.f32 %v260, %v246
    %v262 = vadd.f32 %v261, %v247
    %v263 = vadd.f32 %v262, %v248
    %v264 = vadd.f32 %v263, %v249
    %v265 = vrot.slane %v264, 4
    %v266 = vadd.f32 %v264, %v265
    %v267 = vrot.slane %v266, 2
    %v268 = vadd.f32 %v266, %v267
    %v269 = vrot.slane %v268, 1
    %v270 = vadd.f32 %v268, %v269
    %v271 = vadd.f32 %v233, %v270
    %272 = vst [vmem:[#allocation6] sm:$0x1] %v271
    // Predicated region
    $region14: #{tpu_custom_call.1} parent=1 // pred_check
      _
    $region15: #{tpu_custom_call.1} parent=1 // pred_check_branch
      %274 = sbr.rel (0) target = $region17
    $region16: #{tpu_custom_call.1} parent=1 // pred_region
      %276 = vsyncadd [#allocation3], 0
      %s277 = sshll.u32 [#allocation2], 4
      %s278 = int_to_ptr.vmem [resolvable:$true] %s277
      %s279 = sshll.u32 %s2, 4
      %s280 = int_to_ptr.hbm [resolvable:$true] %s279
      %285 = dma.vmem_to_hbm [thread:$0]  %s278, 1024, %s280, [#allocation3], 64, 64, 4
    $region17: #{tpu_custom_call.1} parent=1 // pred_fallthru
      _
    // Predicated region
    $region18: #{tpu_custom_call.1} parent=1 // pred_check
      _
    $region19: #{tpu_custom_call.1} parent=1 // pred_check_branch
      %287 = sbr.rel (0) target = $region21
    $region20: #{tpu_custom_call.1} parent=1 // pred_region
      %289 = vsyncadd [#allocation5], 0
      %s291 = sshll.u32 [#allocation4], 4
      %s292 = int_to_ptr.vmem [resolvable:$true] %s291
      %s293 = sshll.u32 %s3, 4
      %s294 = int_to_ptr.hbm [resolvable:$true] %s293
      %296 = dma.vmem_to_hbm [thread:$0]  %s292, 16, %s294, [#allocation5]
    $region21: #{tpu_custom_call.1} parent=1 // pred_fallthru
      _
    // Predicated region
    $region22: #{tpu_custom_call.1} parent=1 // pred_check
      _
    $region23: #{tpu_custom_call.1} parent=1 // pred_check_branch
      %298 = sbr.rel (0) target = $region25
    $region24: #{tpu_custom_call.1} parent=1 // pred_region
      %300 = vsyncadd [#allocation5], 0
      %s302 = sshll.u32 [#allocation6], 4
      %s303 = int_to_ptr.vmem [resolvable:$true] %s302
      %s304 = sshll.u32 %s4, 4
      %s305 = int_to_ptr.hbm [resolvable:$true] %s304
      %307 = dma.vmem_to_hbm [thread:$0]  %s303, 16, %s305, [#allocation5]
    $region25: #{tpu_custom_call.1} parent=1 // pred_fallthru
      _
    // Predicated region
    $region26: #{tpu_custom_call.1} parent=1 // pred_check
      _
    $region27: #{tpu_custom_call.1} parent=1 // pred_check_branch
      %309 = sbr.rel (0) target = $region29
    $region28: #{tpu_custom_call.1} parent=1 // pred_region
      %311 = dma.done [#allocation3], 1024
    $region29: #{tpu_custom_call.1} parent=1 // pred_fallthru
      _
    // Predicated region
    $region30: #{tpu_custom_call.1} parent=1 // pred_check
      _
    $region31: #{tpu_custom_call.1} parent=1 // pred_check_branch
      %313 = sbr.rel (0) target = $region33
    $region32: #{tpu_custom_call.1} parent=1 // pred_region
      %315 = dma.done [#allocation5], 16
    $region33: #{tpu_custom_call.1} parent=1 // pred_fallthru
      _
    // Predicated region
    $region34: #{tpu_custom_call.1} parent=1 // pred_check
      _
    $region35: #{tpu_custom_call.1} parent=1 // pred_check_branch
      %317 = sbr.rel (0) target = $region37
    $region36: #{tpu_custom_call.1} parent=1 // pred_region
      %319 = dma.done [#allocation5], 16
    $region37: #{tpu_custom_call.1} parent=1 // pred_fallthru
      _
    %320 = vsyncpa [#allocation3], 1
    %321 = vsyncpa [#allocation5], 1

</llo_original>
